<compile_context>
chip_gen: v5e
topology: v5e:2x2
jax: 0.10.0
libtpu: 0.0.40
codegen_flags: <defaults>
</compile_context>

<pallas_src>
import jax
import jax.numpy as jnp
from jax.experimental import pallas as pl
from jax.experimental.pallas import tpu as pltpu

_EPS = 1e-5

# Offsets into the packed parameter buffer (flat float32).
_OFF_W1 = 0      # fc1 weight  (4, 4) row-major, PyTorch (out, in)
_OFF_B1 = 16     # fc1 bias    (4,)
_OFF_W2 = 20     # fc2 weight  (2, 4) row-major
_OFF_B2 = 28     # fc2 bias    (2,)
_OFF_G0 = 30     # bn0 gamma   (4,)
_OFF_BE0 = 34    # bn0 beta    (4,)
_OFF_G1 = 38     # bn1 gamma   (4,)
_OFF_BE1 = 42    # bn1 beta    (4,)
_N_PACKED = 64   # padded size of the packed parameter vector


def _top_model_kernel(a_ref, b_ref, p_ref, o_ref):
    """a_ref, b_ref: (2, B) f32 VMEM; p_ref: (_N_PACKED,) f32 SMEM; o_ref: (2, B)."""
    n = a_ref.shape[1]
    inv_n = 1.0 / n

    xa = a_ref[...]                                  # (2, B)
    xb = b_ref[...]                                  # (2, B)
    # torch.cat(dim=1) in (B, F) layout == stacking feature rows here.
    feats = [xa[0:1, :], xa[1:2, :], xb[0:1, :], xb[1:2, :]]   # 4 x (1, B)

    def bn_relu(r, gamma, beta):
        # Training-mode BatchNorm1d over the batch (lane) axis, folded to one
        # multiply + one add per element, followed by ReLU.
        m = jnp.sum(r, axis=-1, keepdims=True) * inv_n             # (1, 1)
        d = r - m
        v = jnp.sum(d * d, axis=-1, keepdims=True) * inv_n         # biased var
        scale = gamma * jax.lax.rsqrt(v + _EPS)                     # (1, 1)
        shift = beta - m * scale
        return jnp.maximum(r * scale + shift, 0.0)

    # bn0_top + relu (per input feature row).
    x = [bn_relu(feats[k], p_ref[_OFF_G0 + k], p_ref[_OFF_BE0 + k])
         for k in range(4)]

    # fc1_top : Linear(4 -> 4), unrolled VPU multiply-adds (no MXU).
    h = []
    for j in range(4):
        y = x[0] * p_ref[_OFF_W1 + 4 * j + 0]
        for k in range(1, 4):
            y = y + x[k] * p_ref[_OFF_W1 + 4 * j + k]
        h.append(y + p_ref[_OFF_B1 + j])

    # bn1_top + relu.
    z = [bn_relu(h[j], p_ref[_OFF_G1 + j], p_ref[_OFF_BE1 + j])
         for j in range(4)]

    # fc2_top : Linear(4 -> 2), unrolled VPU multiply-adds.
    outs = []
    for j in range(2):
        y = z[0] * p_ref[_OFF_W2 + 4 * j + 0]
        for k in range(1, 4):
            y = y + z[k] * p_ref[_OFF_W2 + 4 * j + k]
        outs.append(y + p_ref[_OFF_B2 + j])

    o_ref[...] = jnp.concatenate(outs, axis=0)                      # (2, B)


def _pack_params(params):
    pieces = [
        params["fc1_w"].astype(jnp.float32).reshape(-1),
        params["fc1_b"].astype(jnp.float32).reshape(-1),
        params["fc2_w"].astype(jnp.float32).reshape(-1),
        params["fc2_b"].astype(jnp.float32).reshape(-1),
        params["bn0_gamma"].astype(jnp.float32).reshape(-1),
        params["bn0_beta"].astype(jnp.float32).reshape(-1),
        params["bn1_gamma"].astype(jnp.float32).reshape(-1),
        params["bn1_beta"].astype(jnp.float32).reshape(-1),
    ]
    flat = jnp.concatenate(pieces)
    pad = _N_PACKED - flat.shape[0]
    return jnp.concatenate([flat, jnp.zeros((pad,), jnp.float32)])


def top_model_for_bcw(inp_a, inp_b, params):
    """inp_a, inp_b : (B, 2) float32.  Returns (B, 2) float32."""
    a = jnp.asarray(inp_a, jnp.float32).T           # (2, B) feature-major
    b = jnp.asarray(inp_b, jnp.float32).T           # (2, B)
    n = a.shape[1]
    packed = _pack_params(params)

    vmem = pl.BlockSpec(memory_space=pltpu.MemorySpace.VMEM)
    smem = pl.BlockSpec(memory_space=pltpu.MemorySpace.SMEM)

    out_t = pl.pallas_call(
        _top_model_kernel,
        out_shape=jax.ShapeDtypeStruct((2, n), jnp.float32),
        in_specs=[vmem, vmem, smem],
        out_specs=vmem,
        cost_estimate=pl.CostEstimate(
            flops=100 * n,
            transcendentals=8,
            bytes_accessed=24 * n + 4 * _N_PACKED,
        ),
    )(a, b, packed)
    return out_t.T                                   # (B, 2)


def init_params(key):
    """Deterministic init matching the module's shapes (kaiming-normal weights)."""
    k1, k2, k3, k4 = jax.random.split(key, 4)
    # nn.init.kaiming_normal_: std = sqrt(2 / fan_in), fan_in = in_features
    fc1_w = jax.random.normal(k1, (4, 4), jnp.float32) * jnp.sqrt(2.0 / 4.0)
    fc2_w = jax.random.normal(k2, (2, 4), jnp.float32) * jnp.sqrt(2.0 / 4.0)
    # Linear bias default: U(-1/sqrt(fan_in), 1/sqrt(fan_in))
    fc1_b = jax.random.uniform(k3, (4,), jnp.float32, -0.5, 0.5)
    fc2_b = jax.random.uniform(k4, (2,), jnp.float32, -0.5, 0.5)
    return {
        "fc1_w": fc1_w, "fc1_b": fc1_b,
        "fc2_w": fc2_w, "fc2_b": fc2_b,
        "bn0_gamma": jnp.ones((4,), jnp.float32),
        "bn0_beta": jnp.zeros((4,), jnp.float32),
        "bn1_gamma": jnp.ones((4,), jnp.float32),
        "bn1_beta": jnp.zeros((4,), jnp.float32),
    }


def _reference(inp_a, inp_b, params):
    """Pure-JAX reference of the same forward pass (training-mode BN)."""
    eps = 1e-5
    x = jnp.concatenate([inp_a, inp_b], axis=1)
    m0 = jnp.mean(x, axis=0, keepdims=True)
    v0 = jnp.mean((x - m0) ** 2, axis=0, keepdims=True)
    x = (x - m0) / jnp.sqrt(v0 + eps) * params["bn0_gamma"] + params["bn0_beta"]
    x = jnp.maximum(x, 0.0)
    x = x @ params["fc1_w"].T + params["fc1_b"]
    m1 = jnp.mean(x, axis=0, keepdims=True)
    v1 = jnp.mean((x - m1) ** 2, axis=0, keepdims=True)
    x = (x - m1) / jnp.sqrt(v1 + eps) * params["bn1_gamma"] + params["bn1_beta"]
    x = jnp.maximum(x, 0.0)
    return x @ params["fc2_w"].T + params["fc2_b"]


if __name__ == "__main__":
    key = jax.random.PRNGKey(0)
    k_a, k_b, k_p = jax.random.split(key, 3)

    B = 8  # batch
    inp_a = jax.random.normal(k_a, (B, 2), jnp.float32)
    inp_b = jax.random.normal(k_b, (B, 2), jnp.float32)
    params = init_params(k_p)

    out = top_model_for_bcw(inp_a, inp_b, params)
    out = jax.block_until_ready(out)

    ref = _reference(inp_a, inp_b, params)
    assert out.shape == (B, 2)
    assert jnp.allclose(out, ref, atol=1e-4, rtol=1e-4), (out, ref)
    print("KERNEL_OK")
</pallas_src>

<mosaic_0001>
module attributes {stable_mosaic.version = 11 : i64} {
  func.func @_top_model_kernel(%arg0: memref<2x8xf32, #tpu.memory_space<vmem>>, %arg1: memref<2x8xf32, #tpu.memory_space<vmem>>, %arg2: memref<64xf32, #tpu.memory_space<smem>>, %arg3: memref<2x8xf32, #tpu.memory_space<vmem>>) attributes {dimension_semantics = [], scalar_prefetch = 0 : i64, scratch_operands = 0 : i64, tpu.core_type = #tpu.core_type<tc>} {
    %c0 = arith.constant 0 : index
    %c0_0 = arith.constant 0 : index
    %0 = vector.load %arg0[%c0, %c0_0] : memref<2x8xf32, #tpu.memory_space<vmem>>, vector<2x8xf32>
    %c0_1 = arith.constant 0 : index
    %c0_2 = arith.constant 0 : index
    %1 = vector.load %arg1[%c0_1, %c0_2] : memref<2x8xf32, #tpu.memory_space<vmem>>, vector<2x8xf32>
    %2 = vector.extract_strided_slice %0 {offsets = [0, 0], sizes = [1, 8], strides = [1, 1]} : vector<2x8xf32> to vector<1x8xf32>
    %3 = vector.extract_strided_slice %0 {offsets = [1, 0], sizes = [1, 8], strides = [1, 1]} : vector<2x8xf32> to vector<1x8xf32>
    %4 = vector.extract_strided_slice %1 {offsets = [0, 0], sizes = [1, 8], strides = [1, 1]} : vector<2x8xf32> to vector<1x8xf32>
    %5 = vector.extract_strided_slice %1 {offsets = [1, 0], sizes = [1, 8], strides = [1, 1]} : vector<2x8xf32> to vector<1x8xf32>
    %c30 = arith.constant 30 : index
    %6 = memref.load %arg2[%c30] : memref<64xf32, #tpu.memory_space<smem>>
    %c34 = arith.constant 34 : index
    %7 = memref.load %arg2[%c34] : memref<64xf32, #tpu.memory_space<smem>>
    %cst = arith.constant dense<0.000000e+00> : vector<1xf32>
    %8 = vector.multi_reduction <add>, %2, %cst [1] : vector<1x8xf32> to vector<1xf32>
    %9 = vector.shape_cast %8 : vector<1xf32> to vector<1x1xf32>
    %cst_3 = arith.constant 1.250000e-01 : f32
    %10 = vector.broadcast %cst_3 : f32 to vector<1x1xf32>
    %11 = arith.mulf %9, %10 : vector<1x1xf32>
    %12 = vector.broadcast %11 : vector<1x1xf32> to vector<1x8xf32>
    %13 = arith.subf %2, %12 : vector<1x8xf32>
    %14 = arith.mulf %13, %13 : vector<1x8xf32>
    %cst_4 = arith.constant dense<0.000000e+00> : vector<1xf32>
    %15 = vector.multi_reduction <add>, %14, %cst_4 [1] : vector<1x8xf32> to vector<1xf32>
    %16 = vector.shape_cast %15 : vector<1xf32> to vector<1x1xf32>
    %cst_5 = arith.constant 1.250000e-01 : f32
    %17 = vector.broadcast %cst_5 : f32 to vector<1x1xf32>
    %18 = arith.mulf %16, %17 : vector<1x1xf32>
    %cst_6 = arith.constant 9.99999974E-6 : f32
    %19 = vector.broadcast %cst_6 : f32 to vector<1x1xf32>
    %20 = arith.addf %18, %19 : vector<1x1xf32>
    %21 = math.rsqrt %20 : vector<1x1xf32>
    %22 = vector.broadcast %6 : f32 to vector<1x1xf32>
    %23 = arith.mulf %22, %21 : vector<1x1xf32>
    %24 = arith.mulf %11, %23 : vector<1x1xf32>
    %25 = vector.broadcast %7 : f32 to vector<1x1xf32>
    %26 = arith.subf %25, %24 : vector<1x1xf32>
    %27 = vector.broadcast %23 : vector<1x1xf32> to vector<1x8xf32>
    %28 = arith.mulf %2, %27 : vector<1x8xf32>
    %29 = vector.broadcast %26 : vector<1x1xf32> to vector<1x8xf32>
    %30 = arith.addf %28, %29 : vector<1x8xf32>
    %cst_7 = arith.constant 0.000000e+00 : f32
    %31 = vector.broadcast %cst_7 : f32 to vector<1x8xf32>
    %32 = arith.maximumf %30, %31 : vector<1x8xf32>
    %c31 = arith.constant 31 : index
    %33 = memref.load %arg2[%c31] : memref<64xf32, #tpu.memory_space<smem>>
    %c35 = arith.constant 35 : index
    %34 = memref.load %arg2[%c35] : memref<64xf32, #tpu.memory_space<smem>>
    %cst_8 = arith.constant dense<0.000000e+00> : vector<1xf32>
    %35 = vector.multi_reduction <add>, %3, %cst_8 [1] : vector<1x8xf32> to vector<1xf32>
    %36 = vector.shape_cast %35 : vector<1xf32> to vector<1x1xf32>
    %cst_9 = arith.constant 1.250000e-01 : f32
    %37 = vector.broadcast %cst_9 : f32 to vector<1x1xf32>
    %38 = arith.mulf %36, %37 : vector<1x1xf32>
    %39 = vector.broadcast %38 : vector<1x1xf32> to vector<1x8xf32>
    %40 = arith.subf %3, %39 : vector<1x8xf32>
    %41 = arith.mulf %40, %40 : vector<1x8xf32>
    %cst_10 = arith.constant dense<0.000000e+00> : vector<1xf32>
    %42 = vector.multi_reduction <add>, %41, %cst_10 [1] : vector<1x8xf32> to vector<1xf32>
    %43 = vector.shape_cast %42 : vector<1xf32> to vector<1x1xf32>
    %cst_11 = arith.constant 1.250000e-01 : f32
    %44 = vector.broadcast %cst_11 : f32 to vector<1x1xf32>
    %45 = arith.mulf %43, %44 : vector<1x1xf32>
    %cst_12 = arith.constant 9.99999974E-6 : f32
    %46 = vector.broadcast %cst_12 : f32 to vector<1x1xf32>
    %47 = arith.addf %45, %46 : vector<1x1xf32>
    %48 = math.rsqrt %47 : vector<1x1xf32>
    %49 = vector.broadcast %33 : f32 to vector<1x1xf32>
    %50 = arith.mulf %49, %48 : vector<1x1xf32>
    %51 = arith.mulf %38, %50 : vector<1x1xf32>
    %52 = vector.broadcast %34 : f32 to vector<1x1xf32>
    %53 = arith.subf %52, %51 : vector<1x1xf32>
    %54 = vector.broadcast %50 : vector<1x1xf32> to vector<1x8xf32>
    %55 = arith.mulf %3, %54 : vector<1x8xf32>
    %56 = vector.broadcast %53 : vector<1x1xf32> to vector<1x8xf32>
    %57 = arith.addf %55, %56 : vector<1x8xf32>
    %cst_13 = arith.constant 0.000000e+00 : f32
    %58 = vector.broadcast %cst_13 : f32 to vector<1x8xf32>
    %59 = arith.maximumf %57, %58 : vector<1x8xf32>
    %c32 = arith.constant 32 : index
    %60 = memref.load %arg2[%c32] : memref<64xf32, #tpu.memory_space<smem>>
    %c36 = arith.constant 36 : index
    %61 = memref.load %arg2[%c36] : memref<64xf32, #tpu.memory_space<smem>>
    %cst_14 = arith.constant dense<0.000000e+00> : vector<1xf32>
    %62 = vector.multi_reduction <add>, %4, %cst_14 [1] : vector<1x8xf32> to vector<1xf32>
    %63 = vector.shape_cast %62 : vector<1xf32> to vector<1x1xf32>
    %cst_15 = arith.constant 1.250000e-01 : f32
    %64 = vector.broadcast %cst_15 : f32 to vector<1x1xf32>
    %65 = arith.mulf %63, %64 : vector<1x1xf32>
    %66 = vector.broadcast %65 : vector<1x1xf32> to vector<1x8xf32>
    %67 = arith.subf %4, %66 : vector<1x8xf32>
    %68 = arith.mulf %67, %67 : vector<1x8xf32>
    %cst_16 = arith.constant dense<0.000000e+00> : vector<1xf32>
    %69 = vector.multi_reduction <add>, %68, %cst_16 [1] : vector<1x8xf32> to vector<1xf32>
    %70 = vector.shape_cast %69 : vector<1xf32> to vector<1x1xf32>
    %cst_17 = arith.constant 1.250000e-01 : f32
    %71 = vector.broadcast %cst_17 : f32 to vector<1x1xf32>
    %72 = arith.mulf %70, %71 : vector<1x1xf32>
    %cst_18 = arith.constant 9.99999974E-6 : f32
    %73 = vector.broadcast %cst_18 : f32 to vector<1x1xf32>
    %74 = arith.addf %72, %73 : vector<1x1xf32>
    %75 = math.rsqrt %74 : vector<1x1xf32>
    %76 = vector.broadcast %60 : f32 to vector<1x1xf32>
    %77 = arith.mulf %76, %75 : vector<1x1xf32>
    %78 = arith.mulf %65, %77 : vector<1x1xf32>
    %79 = vector.broadcast %61 : f32 to vector<1x1xf32>
    %80 = arith.subf %79, %78 : vector<1x1xf32>
    %81 = vector.broadcast %77 : vector<1x1xf32> to vector<1x8xf32>
    %82 = arith.mulf %4, %81 : vector<1x8xf32>
    %83 = vector.broadcast %80 : vector<1x1xf32> to vector<1x8xf32>
    %84 = arith.addf %82, %83 : vector<1x8xf32>
    %cst_19 = arith.constant 0.000000e+00 : f32
    %85 = vector.broadcast %cst_19 : f32 to vector<1x8xf32>
    %86 = arith.maximumf %84, %85 : vector<1x8xf32>
    %c33 = arith.constant 33 : index
    %87 = memref.load %arg2[%c33] : memref<64xf32, #tpu.memory_space<smem>>
    %c37 = arith.constant 37 : index
    %88 = memref.load %arg2[%c37] : memref<64xf32, #tpu.memory_space<smem>>
    %cst_20 = arith.constant dense<0.000000e+00> : vector<1xf32>
    %89 = vector.multi_reduction <add>, %5, %cst_20 [1] : vector<1x8xf32> to vector<1xf32>
    %90 = vector.shape_cast %89 : vector<1xf32> to vector<1x1xf32>
    %cst_21 = arith.constant 1.250000e-01 : f32
    %91 = vector.broadcast %cst_21 : f32 to vector<1x1xf32>
    %92 = arith.mulf %90, %91 : vector<1x1xf32>
    %93 = vector.broadcast %92 : vector<1x1xf32> to vector<1x8xf32>
    %94 = arith.subf %5, %93 : vector<1x8xf32>
    %95 = arith.mulf %94, %94 : vector<1x8xf32>
    %cst_22 = arith.constant dense<0.000000e+00> : vector<1xf32>
    %96 = vector.multi_reduction <add>, %95, %cst_22 [1] : vector<1x8xf32> to vector<1xf32>
    %97 = vector.shape_cast %96 : vector<1xf32> to vector<1x1xf32>
    %cst_23 = arith.constant 1.250000e-01 : f32
    %98 = vector.broadcast %cst_23 : f32 to vector<1x1xf32>
    %99 = arith.mulf %97, %98 : vector<1x1xf32>
    %cst_24 = arith.constant 9.99999974E-6 : f32
    %100 = vector.broadcast %cst_24 : f32 to vector<1x1xf32>
    %101 = arith.addf %99, %100 : vector<1x1xf32>
    %102 = math.rsqrt %101 : vector<1x1xf32>
    %103 = vector.broadcast %87 : f32 to vector<1x1xf32>
    %104 = arith.mulf %103, %102 : vector<1x1xf32>
    %105 = arith.mulf %92, %104 : vector<1x1xf32>
    %106 = vector.broadcast %88 : f32 to vector<1x1xf32>
    %107 = arith.subf %106, %105 : vector<1x1xf32>
    %108 = vector.broadcast %104 : vector<1x1xf32> to vector<1x8xf32>
    %109 = arith.mulf %5, %108 : vector<1x8xf32>
    %110 = vector.broadcast %107 : vector<1x1xf32> to vector<1x8xf32>
    %111 = arith.addf %109, %110 : vector<1x8xf32>
    %cst_25 = arith.constant 0.000000e+00 : f32
    %112 = vector.broadcast %cst_25 : f32 to vector<1x8xf32>
    %113 = arith.maximumf %111, %112 : vector<1x8xf32>
    %c0_26 = arith.constant 0 : index
    %114 = memref.load %arg2[%c0_26] : memref<64xf32, #tpu.memory_space<smem>>
    %115 = vector.broadcast %114 : f32 to vector<1x8xf32>
    %116 = arith.mulf %32, %115 : vector<1x8xf32>
    %c1 = arith.constant 1 : index
    %117 = memref.load %arg2[%c1] : memref<64xf32, #tpu.memory_space<smem>>
    %118 = vector.broadcast %117 : f32 to vector<1x8xf32>
    %119 = arith.mulf %59, %118 : vector<1x8xf32>
    %120 = arith.addf %116, %119 : vector<1x8xf32>
    %c2 = arith.constant 2 : index
    %121 = memref.load %arg2[%c2] : memref<64xf32, #tpu.memory_space<smem>>
    %122 = vector.broadcast %121 : f32 to vector<1x8xf32>
    %123 = arith.mulf %86, %122 : vector<1x8xf32>
    %124 = arith.addf %120, %123 : vector<1x8xf32>
    %c3 = arith.constant 3 : index
    %125 = memref.load %arg2[%c3] : memref<64xf32, #tpu.memory_space<smem>>
    %126 = vector.broadcast %125 : f32 to vector<1x8xf32>
    %127 = arith.mulf %113, %126 : vector<1x8xf32>
    %128 = arith.addf %124, %127 : vector<1x8xf32>
    %c16 = arith.constant 16 : index
    %129 = memref.load %arg2[%c16] : memref<64xf32, #tpu.memory_space<smem>>
    %130 = vector.broadcast %129 : f32 to vector<1x8xf32>
    %131 = arith.addf %128, %130 : vector<1x8xf32>
    %c4 = arith.constant 4 : index
    %132 = memref.load %arg2[%c4] : memref<64xf32, #tpu.memory_space<smem>>
    %133 = vector.broadcast %132 : f32 to vector<1x8xf32>
    %134 = arith.mulf %32, %133 : vector<1x8xf32>
    %c5 = arith.constant 5 : index
    %135 = memref.load %arg2[%c5] : memref<64xf32, #tpu.memory_space<smem>>
    %136 = vector.broadcast %135 : f32 to vector<1x8xf32>
    %137 = arith.mulf %59, %136 : vector<1x8xf32>
    %138 = arith.addf %134, %137 : vector<1x8xf32>
    %c6 = arith.constant 6 : index
    %139 = memref.load %arg2[%c6] : memref<64xf32, #tpu.memory_space<smem>>
    %140 = vector.broadcast %139 : f32 to vector<1x8xf32>
    %141 = arith.mulf %86, %140 : vector<1x8xf32>
    %142 = arith.addf %138, %141 : vector<1x8xf32>
    %c7 = arith.constant 7 : index
    %143 = memref.load %arg2[%c7] : memref<64xf32, #tpu.memory_space<smem>>
    %144 = vector.broadcast %143 : f32 to vector<1x8xf32>
    %145 = arith.mulf %113, %144 : vector<1x8xf32>
    %146 = arith.addf %142, %145 : vector<1x8xf32>
    %c17 = arith.constant 17 : index
    %147 = memref.load %arg2[%c17] : memref<64xf32, #tpu.memory_space<smem>>
    %148 = vector.broadcast %147 : f32 to vector<1x8xf32>
    %149 = arith.addf %146, %148 : vector<1x8xf32>
    %c8 = arith.constant 8 : index
    %150 = memref.load %arg2[%c8] : memref<64xf32, #tpu.memory_space<smem>>
    %151 = vector.broadcast %150 : f32 to vector<1x8xf32>
    %152 = arith.mulf %32, %151 : vector<1x8xf32>
    %c9 = arith.constant 9 : index
    %153 = memref.load %arg2[%c9] : memref<64xf32, #tpu.memory_space<smem>>
    %154 = vector.broadcast %153 : f32 to vector<1x8xf32>
    %155 = arith.mulf %59, %154 : vector<1x8xf32>
    %156 = arith.addf %152, %155 : vector<1x8xf32>
    %c10 = arith.constant 10 : index
    %157 = memref.load %arg2[%c10] : memref<64xf32, #tpu.memory_space<smem>>
    %158 = vector.broadcast %157 : f32 to vector<1x8xf32>
    %159 = arith.mulf %86, %158 : vector<1x8xf32>
    %160 = arith.addf %156, %159 : vector<1x8xf32>
    %c11 = arith.constant 11 : index
    %161 = memref.load %arg2[%c11] : memref<64xf32, #tpu.memory_space<smem>>
    %162 = vector.broadcast %161 : f32 to vector<1x8xf32>
    %163 = arith.mulf %113, %162 : vector<1x8xf32>
    %164 = arith.addf %160, %163 : vector<1x8xf32>
    %c18 = arith.constant 18 : index
    %165 = memref.load %arg2[%c18] : memref<64xf32, #tpu.memory_space<smem>>
    %166 = vector.broadcast %165 : f32 to vector<1x8xf32>
    %167 = arith.addf %164, %166 : vector<1x8xf32>
    %c12 = arith.constant 12 : index
    %168 = memref.load %arg2[%c12] : memref<64xf32, #tpu.memory_space<smem>>
    %169 = vector.broadcast %168 : f32 to vector<1x8xf32>
    %170 = arith.mulf %32, %169 : vector<1x8xf32>
    %c13 = arith.constant 13 : index
    %171 = memref.load %arg2[%c13] : memref<64xf32, #tpu.memory_space<smem>>
    %172 = vector.broadcast %171 : f32 to vector<1x8xf32>
    %173 = arith.mulf %59, %172 : vector<1x8xf32>
    %174 = arith.addf %170, %173 : vector<1x8xf32>
    %c14 = arith.constant 14 : index
    %175 = memref.load %arg2[%c14] : memref<64xf32, #tpu.memory_space<smem>>
    %176 = vector.broadcast %175 : f32 to vector<1x8xf32>
    %177 = arith.mulf %86, %176 : vector<1x8xf32>
    %178 = arith.addf %174, %177 : vector<1x8xf32>
    %c15 = arith.constant 15 : index
    %179 = memref.load %arg2[%c15] : memref<64xf32, #tpu.memory_space<smem>>
    %180 = vector.broadcast %179 : f32 to vector<1x8xf32>
    %181 = arith.mulf %113, %180 : vector<1x8xf32>
    %182 = arith.addf %178, %181 : vector<1x8xf32>
    %c19 = arith.constant 19 : index
    %183 = memref.load %arg2[%c19] : memref<64xf32, #tpu.memory_space<smem>>
    %184 = vector.broadcast %183 : f32 to vector<1x8xf32>
    %185 = arith.addf %182, %184 : vector<1x8xf32>
    %c38 = arith.constant 38 : index
    %186 = memref.load %arg2[%c38] : memref<64xf32, #tpu.memory_space<smem>>
    %c42 = arith.constant 42 : index
    %187 = memref.load %arg2[%c42] : memref<64xf32, #tpu.memory_space<smem>>
    %cst_27 = arith.constant dense<0.000000e+00> : vector<1xf32>
    %188 = vector.multi_reduction <add>, %131, %cst_27 [1] : vector<1x8xf32> to vector<1xf32>
    %189 = vector.shape_cast %188 : vector<1xf32> to vector<1x1xf32>
    %cst_28 = arith.constant 1.250000e-01 : f32
    %190 = vector.broadcast %cst_28 : f32 to vector<1x1xf32>
    %191 = arith.mulf %189, %190 : vector<1x1xf32>
    %192 = vector.broadcast %191 : vector<1x1xf32> to vector<1x8xf32>
    %193 = arith.subf %131, %192 : vector<1x8xf32>
    %194 = arith.mulf %193, %193 : vector<1x8xf32>
    %cst_29 = arith.constant dense<0.000000e+00> : vector<1xf32>
    %195 = vector.multi_reduction <add>, %194, %cst_29 [1] : vector<1x8xf32> to vector<1xf32>
    %196 = vector.shape_cast %195 : vector<1xf32> to vector<1x1xf32>
    %cst_30 = arith.constant 1.250000e-01 : f32
    %197 = vector.broadcast %cst_30 : f32 to vector<1x1xf32>
    %198 = arith.mulf %196, %197 : vector<1x1xf32>
    %cst_31 = arith.constant 9.99999974E-6 : f32
    %199 = vector.broadcast %cst_31 : f32 to vector<1x1xf32>
    %200 = arith.addf %198, %199 : vector<1x1xf32>
    %201 = math.rsqrt %200 : vector<1x1xf32>
    %202 = vector.broadcast %186 : f32 to vector<1x1xf32>
    %203 = arith.mulf %202, %201 : vector<1x1xf32>
    %204 = arith.mulf %191, %203 : vector<1x1xf32>
    %205 = vector.broadcast %187 : f32 to vector<1x1xf32>
    %206 = arith.subf %205, %204 : vector<1x1xf32>
    %207 = vector.broadcast %203 : vector<1x1xf32> to vector<1x8xf32>
    %208 = arith.mulf %131, %207 : vector<1x8xf32>
    %209 = vector.broadcast %206 : vector<1x1xf32> to vector<1x8xf32>
    %210 = arith.addf %208, %209 : vector<1x8xf32>
    %cst_32 = arith.constant 0.000000e+00 : f32
    %211 = vector.broadcast %cst_32 : f32 to vector<1x8xf32>
    %212 = arith.maximumf %210, %211 : vector<1x8xf32>
    %c39 = arith.constant 39 : index
    %213 = memref.load %arg2[%c39] : memref<64xf32, #tpu.memory_space<smem>>
    %c43 = arith.constant 43 : index
    %214 = memref.load %arg2[%c43] : memref<64xf32, #tpu.memory_space<smem>>
    %cst_33 = arith.constant dense<0.000000e+00> : vector<1xf32>
    %215 = vector.multi_reduction <add>, %149, %cst_33 [1] : vector<1x8xf32> to vector<1xf32>
    %216 = vector.shape_cast %215 : vector<1xf32> to vector<1x1xf32>
    %cst_34 = arith.constant 1.250000e-01 : f32
    %217 = vector.broadcast %cst_34 : f32 to vector<1x1xf32>
    %218 = arith.mulf %216, %217 : vector<1x1xf32>
    %219 = vector.broadcast %218 : vector<1x1xf32> to vector<1x8xf32>
    %220 = arith.subf %149, %219 : vector<1x8xf32>
    %221 = arith.mulf %220, %220 : vector<1x8xf32>
    %cst_35 = arith.constant dense<0.000000e+00> : vector<1xf32>
    %222 = vector.multi_reduction <add>, %221, %cst_35 [1] : vector<1x8xf32> to vector<1xf32>
    %223 = vector.shape_cast %222 : vector<1xf32> to vector<1x1xf32>
    %cst_36 = arith.constant 1.250000e-01 : f32
    %224 = vector.broadcast %cst_36 : f32 to vector<1x1xf32>
    %225 = arith.mulf %223, %224 : vector<1x1xf32>
    %cst_37 = arith.constant 9.99999974E-6 : f32
    %226 = vector.broadcast %cst_37 : f32 to vector<1x1xf32>
    %227 = arith.addf %225, %226 : vector<1x1xf32>
    %228 = math.rsqrt %227 : vector<1x1xf32>
    %229 = vector.broadcast %213 : f32 to vector<1x1xf32>
    %230 = arith.mulf %229, %228 : vector<1x1xf32>
    %231 = arith.mulf %218, %230 : vector<1x1xf32>
    %232 = vector.broadcast %214 : f32 to vector<1x1xf32>
    %233 = arith.subf %232, %231 : vector<1x1xf32>
    %234 = vector.broadcast %230 : vector<1x1xf32> to vector<1x8xf32>
    %235 = arith.mulf %149, %234 : vector<1x8xf32>
    %236 = vector.broadcast %233 : vector<1x1xf32> to vector<1x8xf32>
    %237 = arith.addf %235, %236 : vector<1x8xf32>
    %cst_38 = arith.constant 0.000000e+00 : f32
    %238 = vector.broadcast %cst_38 : f32 to vector<1x8xf32>
    %239 = arith.maximumf %237, %238 : vector<1x8xf32>
    %c40 = arith.constant 40 : index
    %240 = memref.load %arg2[%c40] : memref<64xf32, #tpu.memory_space<smem>>
    %c44 = arith.constant 44 : index
    %241 = memref.load %arg2[%c44] : memref<64xf32, #tpu.memory_space<smem>>
    %cst_39 = arith.constant dense<0.000000e+00> : vector<1xf32>
    %242 = vector.multi_reduction <add>, %167, %cst_39 [1] : vector<1x8xf32> to vector<1xf32>
    %243 = vector.shape_cast %242 : vector<1xf32> to vector<1x1xf32>
    %cst_40 = arith.constant 1.250000e-01 : f32
    %244 = vector.broadcast %cst_40 : f32 to vector<1x1xf32>
    %245 = arith.mulf %243, %244 : vector<1x1xf32>
    %246 = vector.broadcast %245 : vector<1x1xf32> to vector<1x8xf32>
    %247 = arith.subf %167, %246 : vector<1x8xf32>
    %248 = arith.mulf %247, %247 : vector<1x8xf32>
    %cst_41 = arith.constant dense<0.000000e+00> : vector<1xf32>
    %249 = vector.multi_reduction <add>, %248, %cst_41 [1] : vector<1x8xf32> to vector<1xf32>
    %250 = vector.shape_cast %249 : vector<1xf32> to vector<1x1xf32>
    %cst_42 = arith.constant 1.250000e-01 : f32
    %251 = vector.broadcast %cst_42 : f32 to vector<1x1xf32>
    %252 = arith.mulf %250, %251 : vector<1x1xf32>
    %cst_43 = arith.constant 9.99999974E-6 : f32
    %253 = vector.broadcast %cst_43 : f32 to vector<1x1xf32>
    %254 = arith.addf %252, %253 : vector<1x1xf32>
    %255 = math.rsqrt %254 : vector<1x1xf32>
    %256 = vector.broadcast %240 : f32 to vector<1x1xf32>
    %257 = arith.mulf %256, %255 : vector<1x1xf32>
    %258 = arith.mulf %245, %257 : vector<1x1xf32>
    %259 = vector.broadcast %241 : f32 to vector<1x1xf32>
    %260 = arith.subf %259, %258 : vector<1x1xf32>
    %261 = vector.broadcast %257 : vector<1x1xf32> to vector<1x8xf32>
    %262 = arith.mulf %167, %261 : vector<1x8xf32>
    %263 = vector.broadcast %260 : vector<1x1xf32> to vector<1x8xf32>
    %264 = arith.addf %262, %263 : vector<1x8xf32>
    %cst_44 = arith.constant 0.000000e+00 : f32
    %265 = vector.broadcast %cst_44 : f32 to vector<1x8xf32>
    %266 = arith.maximumf %264, %265 : vector<1x8xf32>
    %c41 = arith.constant 41 : index
    %267 = memref.load %arg2[%c41] : memref<64xf32, #tpu.memory_space<smem>>
    %c45 = arith.constant 45 : index
    %268 = memref.load %arg2[%c45] : memref<64xf32, #tpu.memory_space<smem>>
    %cst_45 = arith.constant dense<0.000000e+00> : vector<1xf32>
    %269 = vector.multi_reduction <add>, %185, %cst_45 [1] : vector<1x8xf32> to vector<1xf32>
    %270 = vector.shape_cast %269 : vector<1xf32> to vector<1x1xf32>
    %cst_46 = arith.constant 1.250000e-01 : f32
    %271 = vector.broadcast %cst_46 : f32 to vector<1x1xf32>
    %272 = arith.mulf %270, %271 : vector<1x1xf32>
    %273 = vector.broadcast %272 : vector<1x1xf32> to vector<1x8xf32>
    %274 = arith.subf %185, %273 : vector<1x8xf32>
    %275 = arith.mulf %274, %274 : vector<1x8xf32>
    %cst_47 = arith.constant dense<0.000000e+00> : vector<1xf32>
    %276 = vector.multi_reduction <add>, %275, %cst_47 [1] : vector<1x8xf32> to vector<1xf32>
    %277 = vector.shape_cast %276 : vector<1xf32> to vector<1x1xf32>
    %cst_48 = arith.constant 1.250000e-01 : f32
    %278 = vector.broadcast %cst_48 : f32 to vector<1x1xf32>
    %279 = arith.mulf %277, %278 : vector<1x1xf32>
    %cst_49 = arith.constant 9.99999974E-6 : f32
    %280 = vector.broadcast %cst_49 : f32 to vector<1x1xf32>
    %281 = arith.addf %279, %280 : vector<1x1xf32>
    %282 = math.rsqrt %281 : vector<1x1xf32>
    %283 = vector.broadcast %267 : f32 to vector<1x1xf32>
    %284 = arith.mulf %283, %282 : vector<1x1xf32>
    %285 = arith.mulf %272, %284 : vector<1x1xf32>
    %286 = vector.broadcast %268 : f32 to vector<1x1xf32>
    %287 = arith.subf %286, %285 : vector<1x1xf32>
    %288 = vector.broadcast %284 : vector<1x1xf32> to vector<1x8xf32>
    %289 = arith.mulf %185, %288 : vector<1x8xf32>
    %290 = vector.broadcast %287 : vector<1x1xf32> to vector<1x8xf32>
    %291 = arith.addf %289, %290 : vector<1x8xf32>
    %cst_50 = arith.constant 0.000000e+00 : f32
    %292 = vector.broadcast %cst_50 : f32 to vector<1x8xf32>
    %293 = arith.maximumf %291, %292 : vector<1x8xf32>
    %c20 = arith.constant 20 : index
    %294 = memref.load %arg2[%c20] : memref<64xf32, #tpu.memory_space<smem>>
    %295 = vector.broadcast %294 : f32 to vector<1x8xf32>
    %296 = arith.mulf %212, %295 : vector<1x8xf32>
    %c21 = arith.constant 21 : index
    %297 = memref.load %arg2[%c21] : memref<64xf32, #tpu.memory_space<smem>>
    %298 = vector.broadcast %297 : f32 to vector<1x8xf32>
    %299 = arith.mulf %239, %298 : vector<1x8xf32>
    %300 = arith.addf %296, %299 : vector<1x8xf32>
    %c22 = arith.constant 22 : index
    %301 = memref.load %arg2[%c22] : memref<64xf32, #tpu.memory_space<smem>>
    %302 = vector.broadcast %301 : f32 to vector<1x8xf32>
    %303 = arith.mulf %266, %302 : vector<1x8xf32>
    %304 = arith.addf %300, %303 : vector<1x8xf32>
    %c23 = arith.constant 23 : index
    %305 = memref.load %arg2[%c23] : memref<64xf32, #tpu.memory_space<smem>>
    %306 = vector.broadcast %305 : f32 to vector<1x8xf32>
    %307 = arith.mulf %293, %306 : vector<1x8xf32>
    %308 = arith.addf %304, %307 : vector<1x8xf32>
    %c28 = arith.constant 28 : index
    %309 = memref.load %arg2[%c28] : memref<64xf32, #tpu.memory_space<smem>>
    %310 = vector.broadcast %309 : f32 to vector<1x8xf32>
    %311 = arith.addf %308, %310 : vector<1x8xf32>
    %c24 = arith.constant 24 : index
    %312 = memref.load %arg2[%c24] : memref<64xf32, #tpu.memory_space<smem>>
    %313 = vector.broadcast %312 : f32 to vector<1x8xf32>
    %314 = arith.mulf %212, %313 : vector<1x8xf32>
    %c25 = arith.constant 25 : index
    %315 = memref.load %arg2[%c25] : memref<64xf32, #tpu.memory_space<smem>>
    %316 = vector.broadcast %315 : f32 to vector<1x8xf32>
    %317 = arith.mulf %239, %316 : vector<1x8xf32>
    %318 = arith.addf %314, %317 : vector<1x8xf32>
    %c26 = arith.constant 26 : index
    %319 = memref.load %arg2[%c26] : memref<64xf32, #tpu.memory_space<smem>>
    %320 = vector.broadcast %319 : f32 to vector<1x8xf32>
    %321 = arith.mulf %266, %320 : vector<1x8xf32>
    %322 = arith.addf %318, %321 : vector<1x8xf32>
    %c27 = arith.constant 27 : index
    %323 = memref.load %arg2[%c27] : memref<64xf32, #tpu.memory_space<smem>>
    %324 = vector.broadcast %323 : f32 to vector<1x8xf32>
    %325 = arith.mulf %293, %324 : vector<1x8xf32>
    %326 = arith.addf %322, %325 : vector<1x8xf32>
    %c29 = arith.constant 29 : index
    %327 = memref.load %arg2[%c29] : memref<64xf32, #tpu.memory_space<smem>>
    %328 = vector.broadcast %327 : f32 to vector<1x8xf32>
    %329 = arith.addf %326, %328 : vector<1x8xf32>
    %330 = tpu.concatenate %311, %329 in 0 : vector<1x8xf32>, vector<1x8xf32> -> vector<2x8xf32>
    %c0_51 = arith.constant 0 : index
    %c0_52 = arith.constant 0 : index
    %331 = vector.load %arg3[%c0_51, %c0_52] : memref<2x8xf32, #tpu.memory_space<vmem>>, vector<2x8xf32>
    tpu.vector_store %arg3[%c0_51, %c0_52], %330 {strides = array<i32>} : memref<2x8xf32, #tpu.memory_space<vmem>>, vector<2x8xf32>,
    return
  }
}

</mosaic_0001>

<llo_original>
// kernel: tpu_custom_call.1
$region0: #{tpu_custom_call.1}
  #allocation0 [shape = 'u32[]', space=smem, size = 0x4, offset = 0x4, fixed_abs, tag = 'smem constant byte address 0x4 - core index']
  #allocation1 [shape = 'u32[72,128]{1,0:T(1,128)}', space=vmem, size = 0x9000, scoped, tag = 'internal scratch']
  %s0 = inlined_call_operand.hbm [shape: f32[2,8], index: 0, kind: input, shape index: {}]
  %s1 = inlined_call_operand.hbm [shape: f32[2,8], index: 1, kind: input, shape index: {}]
  %s2 = inlined_call_operand.vmem [shape: f32[64], index: 2, kind: input, shape index: {}]
  %s3 = inlined_call_operand.hbm [shape: f32[2,8], index: 3, kind: output, shape index: {}]
  %s4 = sld [smem:[#allocation0]]
  $region34: #{tpu_custom_call.1} parent=0
    _
  %s6 = ssub.s32 1, %s4
  %s7 = scalar_select 0, %s6, %s4
  $region1: #{tpu_custom_call.1} parent=0
    #allocation2 [shape = 'u8[1024]{0}', space=vmem, size = 0x400, scoped, tag = 'input window, operand 0, single buffered']
    #allocation3 [shape = 's32[1]{0}', space=sflag, size = 0x4, scoped, tag = 'scoped memory for tpu_custom_call.1']
    #allocation4 [shape = 's32[1]{0}', space=sflag, size = 0x4, scoped, tag = 'scoped memory for tpu_custom_call.1']
    #allocation5 [shape = 's32[1]{0}', space=sflag, size = 0x4, scoped, tag = 'scoped memory for tpu_custom_call.1']
    #allocation6 [shape = 'u8[1024]{0}', space=vmem, size = 0x400, scoped, tag = 'input window, operand 1, single buffered']
    #allocation7 [shape = 's32[1]{0}', space=sflag, size = 0x4, scoped, tag = 'scoped memory for tpu_custom_call.1']
    #allocation8 [shape = 'u8[512]{0}', space=smem, size = 0x200, scoped, tag = 'input window, operand 2, single buffered']
    #allocation9 [shape = 'u8[1024]{0}', space=vmem, size = 0x400, scoped, tag = 'output window, operand 0, single buffered']
    %8 = vsyncpa [#allocation3], 0
    %9 = vsyncpa [#allocation7], 0
    %10 = vsyncpa [#allocation5], 0
    %11 = vsyncpa [#allocation4], 0
    // Predicated region
    $region2: #{tpu_custom_call.1} parent=1 // pred_check
      _
    $region3: #{tpu_custom_call.1} parent=1 // pred_check_branch
      %13 = sbr.rel (0) target = $region5
    $region4: #{tpu_custom_call.1} parent=1 // pred_region
      %15 = vsyncadd [#allocation3], 0
      %s17 = sshll.u32 %s0, 4
      %s18 = int_to_ptr.hbm [resolvable:$true] %s17
      %s19 = sshll.u32 [#allocation2], 4
      %s20 = int_to_ptr.vmem [resolvable:$true] %s19
      %22 = dma.hbm_to_vmem [thread:$0]  %s18, 32, %s20, [#allocation3]
    $region5: #{tpu_custom_call.1} parent=1 // pred_fallthru
      _
    // Predicated region
    $region6: #{tpu_custom_call.1} parent=1 // pred_check
      _
    $region7: #{tpu_custom_call.1} parent=1 // pred_check_branch
      %24 = sbr.rel (0) target = $region9
    $region8: #{tpu_custom_call.1} parent=1 // pred_region
      %26 = vsyncadd [#allocation7], 0
      %s28 = sshll.u32 %s1, 4
      %s29 = int_to_ptr.hbm [resolvable:$true] %s28
      %s30 = sshll.u32 [#allocation6], 4
      %s31 = int_to_ptr.vmem [resolvable:$true] %s30
      %33 = dma.hbm_to_vmem [thread:$0]  %s29, 32, %s31, [#allocation7]
    $region9: #{tpu_custom_call.1} parent=1 // pred_fallthru
      _
    // Predicated region
    $region10: #{tpu_custom_call.1} parent=1 // pred_check
      _
    $region11: #{tpu_custom_call.1} parent=1 // pred_check_branch
      %35 = sbr.rel (0) target = $region13
    $region12: #{tpu_custom_call.1} parent=1 // pred_region
      %37 = vsyncadd [#allocation5], 0
      %s39 = sshll.u32 %s2, 4
      %s40 = int_to_ptr.vmem [resolvable:$true] %s39
      %42 = dma.vmem_to_smem %s40, 16, [#allocation8], [#allocation5]
    $region13: #{tpu_custom_call.1} parent=1 // pred_fallthru
      _
    // Predicated region
    $region14: #{tpu_custom_call.1} parent=1 // pred_check
      _
    $region15: #{tpu_custom_call.1} parent=1 // pred_check_branch
      %44 = sbr.rel (0) target = $region17
    $region16: #{tpu_custom_call.1} parent=1 // pred_region
      %46 = dma.done [#allocation3], 32
    $region17: #{tpu_custom_call.1} parent=1 // pred_fallthru
      _
    // Predicated region
    $region18: #{tpu_custom_call.1} parent=1 // pred_check
      _
    $region19: #{tpu_custom_call.1} parent=1 // pred_check_branch
      %48 = sbr.rel (0) target = $region21
    $region20: #{tpu_custom_call.1} parent=1 // pred_region
      %50 = dma.done [#allocation7], 32
    $region21: #{tpu_custom_call.1} parent=1 // pred_fallthru
      _
    // Predicated region
    $region22: #{tpu_custom_call.1} parent=1 // pred_check
      _
    $region23: #{tpu_custom_call.1} parent=1 // pred_check_branch
      %52 = sbr.rel (0) target = $region25
    $region24: #{tpu_custom_call.1} parent=1 // pred_region
      %54 = dma.done [#allocation5], 16
    $region25: #{tpu_custom_call.1} parent=1 // pred_fallthru
      _
    %55 = sfence
    %v56 = vld [vmem:[#allocation2] sm:$0x3]
    %v57 = vld [vmem:[#allocation6] sm:$0x3]
    %s58 = sld [smem:[#allocation8 + $0x1e]]
    %s59 = sld [smem:[#allocation8 + $0x22]]
    %vm60 = vcmask 57344
    %v61 = vsel %vm60, %v56, 0.0
    %62 = vadd.xlane.f32.xlu0 %v61
    %v63 = vpop.xlane.xlu0 %62
    %v64 = vmul.f32 %v63, 0.125
    %v65 = vsub.f32 %v56, %v64
    %v66 = vmul.f32 %v65, %v65
    %v67 = vsel %vm60, %v66, 0.0
    %68 = vadd.xlane.f32.xlu0 %v67
    %v69 = vpop.xlane.xlu0 %68
    %v70 = vmul.f32 %v69, 0.125
    %v71 = vadd.f32 %v70, 1e-05
    %v72 = vrsqrt.pop %v71
    %v73 = vmul.f32 %v72, %v71
    %v74 = vmul.f32 %v73, %v72
    %v75 = vmul.f32 0.5, %v74
    %v76 = vsub.f32 1.5, %v75
    %v77 = vmul.f32 %v72, %v76
    %vm78 = vweird.f32 %v71
    %vm79 = vweird.f32 %v72
    %vm80 = vmor %vm78, %vm79
    %v81 = vsel %vm80, %v72, %v77
    %v82 = vstv %s58
    %v83 = vmul.f32 %v82, %v81
    %v84 = vmul.f32 %v64, %v83
    %v85 = vstv %s59
    %v86 = vsub.f32 %v85, %v84
    %v87 = vmul.f32 %v56, %v83
    %v88 = vadd.f32 %v87, %v86
    %v89 = vmax.f32 %v88, 0.0
    %s90 = sld [smem:[#allocation8 + $0x1f]]
    %s91 = sld [smem:[#allocation8 + $0x23]]
    %vm92 = vcmask 58369
    %v93 = vsel %vm92, %v56, 0.0
    %94 = vadd.xlane.f32.xlu0 %v93
    %v95 = vpop.xlane.xlu0 %94
    %v96 = vmul.f32 %v95, 0.125
    %v97 = vsub.f32 %v56, %v96
    %v98 = vmul.f32 %v97, %v97
    %v99 = vsel %vm92, %v98, 0.0
    %100 = vadd.xlane.f32.xlu0 %v99
    %v101 = vpop.xlane.xlu0 %100
    %v102 = vmul.f32 %v101, 0.125
    %v103 = vadd.f32 %v102, 1e-05
    %v104 = vrsqrt.pop %v103
    %v105 = vmul.f32 %v104, %v103
    %v106 = vmul.f32 %v105, %v104
    %v107 = vmul.f32 0.5, %v106
    %v108 = vsub.f32 1.5, %v107
    %v109 = vmul.f32 %v104, %v108
    %vm110 = vweird.f32 %v103
    %vm111 = vweird.f32 %v104
    %vm112 = vmor %vm110, %vm111
    %v113 = vsel %vm112, %v104, %v109
    %v114 = vstv %s90
    %v115 = vmul.f32 %v114, %v113
    %v116 = vmul.f32 %v96, %v115
    %v117 = vstv %s91
    %v118 = vsub.f32 %v117, %v116
    %v119 = vmul.f32 %v56, %v115
    %v120 = vadd.f32 %v119, %v118
    %v121 = vmax.f32 %v120, 0.0
    %s122 = sld [smem:[#allocation8 + $0x20]]
    %s123 = sld [smem:[#allocation8 + $0x24]]
    %v124 = vsel %vm60, %v57, 0.0
    %125 = vadd.xlane.f32.xlu0 %v124
    %v126 = vpop.xlane.xlu0 %125
    %v127 = vmul.f32 %v126, 0.125
    %v128 = vsub.f32 %v57, %v127
    %v129 = vmul.f32 %v128, %v128
    %v130 = vsel %vm60, %v129, 0.0
    %131 = vadd.xlane.f32.xlu0 %v130
    %v132 = vpop.xlane.xlu0 %131
    %v133 = vmul.f32 %v132, 0.125
    %v134 = vadd.f32 %v133, 1e-05
    %v135 = vrsqrt.pop %v134
    %v136 = vmul.f32 %v135, %v134
    %v137 = vmul.f32 %v136, %v135
    %v138 = vmul.f32 0.5, %v137
    %v139 = vsub.f32 1.5, %v138
    %v140 = vmul.f32 %v135, %v139
    %vm141 = vweird.f32 %v134
    %vm142 = vweird.f32 %v135
    %vm143 = vmor %vm141, %vm142
    %v144 = vsel %vm143, %v135, %v140
    %v145 = vstv %s122
    %v146 = vmul.f32 %v145, %v144
    %v147 = vmul.f32 %v127, %v146
    %v148 = vstv %s123
    %v149 = vsub.f32 %v148, %v147
    %v150 = vmul.f32 %v57, %v146
    %v151 = vadd.f32 %v150, %v149
    %v152 = vmax.f32 %v151, 0.0
    %s153 = sld [smem:[#allocation8 + $0x21]]
    %s154 = sld [smem:[#allocation8 + $0x25]]
    %v155 = vsel %vm92, %v57, 0.0
    %156 = vadd.xlane.f32.xlu0 %v155
    %v157 = vpop.xlane.xlu0 %156
    %v158 = vmul.f32 %v157, 0.125
    %v159 = vsub.f32 %v57, %v158
    %v160 = vmul.f32 %v159, %v159
    %v161 = vsel %vm92, %v160, 0.0
    %162 = vadd.xlane.f32.xlu0 %v161
    %v163 = vpop.xlane.xlu0 %162
    %v164 = vmul.f32 %v163, 0.125
    %v165 = vadd.f32 %v164, 1e-05
    %v166 = vrsqrt.pop %v165
    %v167 = vmul.f32 %v166, %v165
    %v168 = vmul.f32 %v167, %v166
    %v169 = vmul.f32 0.5, %v168
    %v170 = vsub.f32 1.5, %v169
    %v171 = vmul.f32 %v166, %v170
    %vm172 = vweird.f32 %v165
    %vm173 = vweird.f32 %v166
    %vm174 = vmor %vm172, %vm173
    %v175 = vsel %vm174, %v166, %v171
    %v176 = vstv %s153
    %v177 = vmul.f32 %v176, %v175
    %v178 = vmul.f32 %v158, %v177
    %v179 = vstv %s154
    %v180 = vsub.f32 %v179, %v178
    %v181 = vmul.f32 %v57, %v177
    %v182 = vadd.f32 %v181, %v180
    %v183 = vmax.f32 %v182, 0.0
    %s184 = sld [smem:[#allocation8]]
    %v185 = vstv %s184
    %v186 = vmul.f32 %v89, %v185
    %s187 = sld [smem:[#allocation8 + $0x1]]
    %v188 = vstv %s187
    %v189 = vmul.f32 %v121, %v188
    %v191 = vrot.slane %v189, 1
    %v193 = vadd.f32 %v186, %v191
    %s194 = sld [smem:[#allocation8 + $0x2]]
    %v195 = vstv %s194
    %v196 = vmul.f32 %v152, %v195
    %v197 = vadd.f32 %v193, %v196
    %s198 = sld [smem:[#allocation8 + $0x3]]
    %v199 = vstv %s198
    %v200 = vmul.f32 %v183, %v199
    %v202 = vrot.slane %v200, 1
    %v204 = vadd.f32 %v197, %v202
    %s205 = sld [smem:[#allocation8 + $0x10]]
    %v206 = vstv %s205
    %v207 = vadd.f32 %v204, %v206
    %s208 = sld [smem:[#allocation8 + $0x4]]
    %v209 = vstv %s208
    %v210 = vmul.f32 %v89, %v209
    %s211 = sld [smem:[#allocation8 + $0x5]]
    %v212 = vstv %s211
    %v213 = vmul.f32 %v121, %v212
    %v215 = vrot.slane %v213, 1
    %v217 = vadd.f32 %v210, %v215
    %s218 = sld [smem:[#allocation8 + $0x6]]
    %v219 = vstv %s218
    %v220 = vmul.f32 %v152, %v219
    %v221 = vadd.f32 %v217, %v220
    %s222 = sld [smem:[#allocation8 + $0x7]]
    %v223 = vstv %s222
    %v224 = vmul.f32 %v183, %v223
    %v226 = vrot.slane %v224, 1
    %v228 = vadd.f32 %v221, %v226
    %s229 = sld [smem:[#allocation8 + $0x11]]
    %v230 = vstv %s229
    %v231 = vadd.f32 %v228, %v230
    %s232 = sld [smem:[#allocation8 + $0x8]]
    %v233 = vstv %s232
    %v234 = vmul.f32 %v89, %v233
    %s235 = sld [smem:[#allocation8 + $0x9]]
    %v236 = vstv %s235
    %v237 = vmul.f32 %v121, %v236
    %v239 = vrot.slane %v237, 1
    %v241 = vadd.f32 %v234, %v239
    %s242 = sld [smem:[#allocation8 + $0xa]]
    %v243 = vstv %s242
    %v244 = vmul.f32 %v152, %v243
    %v245 = vadd.f32 %v241, %v244
    %s246 = sld [smem:[#allocation8 + $0xb]]
    %v247 = vstv %s246
    %v248 = vmul.f32 %v183, %v247
    %v250 = vrot.slane %v248, 1
    %v252 = vadd.f32 %v245, %v250
    %s253 = sld [smem:[#allocation8 + $0x12]]
    %v254 = vstv %s253
    %v255 = vadd.f32 %v252, %v254
    %s256 = sld [smem:[#allocation8 + $0xc]]
    %v257 = vstv %s256
    %v258 = vmul.f32 %v89, %v257
    %s259 = sld [smem:[#allocation8 + $0xd]]
    %v260 = vstv %s259
    %v261 = vmul.f32 %v121, %v260
    %v263 = vrot.slane %v261, 1
    %v265 = vadd.f32 %v258, %v263
    %s266 = sld [smem:[#allocation8 + $0xe]]
    %v267 = vstv %s266
    %v268 = vmul.f32 %v152, %v267
    %v269 = vadd.f32 %v265, %v268
    %s270 = sld [smem:[#allocation8 + $0xf]]
    %v271 = vstv %s270
    %v272 = vmul.f32 %v183, %v271
    %v274 = vrot.slane %v272, 1
    %v276 = vadd.f32 %v269, %v274
    %s277 = sld [smem:[#allocation8 + $0x13]]
    %v278 = vstv %s277
    %v279 = vadd.f32 %v276, %v278
    %s280 = sld [smem:[#allocation8 + $0x26]]
    %s281 = sld [smem:[#allocation8 + $0x2a]]
    %v282 = vsel %vm60, %v207, 0.0
    %283 = vadd.xlane.f32.xlu0 %v282
    %v284 = vpop.xlane.xlu0 %283
    %v285 = vmul.f32 %v284, 0.125
    %v286 = vsub.f32 %v207, %v285
    %v287 = vmul.f32 %v286, %v286
    %v288 = vsel %vm60, %v287, 0.0
    %289 = vadd.xlane.f32.xlu0 %v288
    %v290 = vpop.xlane.xlu0 %289
    %v291 = vmul.f32 %v290, 0.125
    %v292 = vadd.f32 %v291, 1e-05
    %v293 = vrsqrt.pop %v292
    %v294 = vmul.f32 %v293, %v292
    %v295 = vmul.f32 %v294, %v293
    %v296 = vmul.f32 0.5, %v295
    %v297 = vsub.f32 1.5, %v296
    %v298 = vmul.f32 %v293, %v297
    %vm299 = vweird.f32 %v292
    %vm300 = vweird.f32 %v293
    %vm301 = vmor %vm299, %vm300
    %v302 = vsel %vm301, %v293, %v298
    %v303 = vstv %s280
    %v304 = vmul.f32 %v303, %v302
    %v305 = vmul.f32 %v285, %v304
    %v306 = vstv %s281
    %v307 = vsub.f32 %v306, %v305
    %v308 = vmul.f32 %v207, %v304
    %v309 = vadd.f32 %v308, %v307
    %v310 = vmax.f32 %v309, 0.0
    %s311 = sld [smem:[#allocation8 + $0x27]]
    %s312 = sld [smem:[#allocation8 + $0x2b]]
    %v313 = vsel %vm60, %v231, 0.0
    %314 = vadd.xlane.f32.xlu0 %v313
    %v315 = vpop.xlane.xlu0 %314
    %v316 = vmul.f32 %v315, 0.125
    %v317 = vsub.f32 %v231, %v316
    %v318 = vmul.f32 %v317, %v317
    %v319 = vsel %vm60, %v318, 0.0
    %320 = vadd.xlane.f32.xlu0 %v319
    %v321 = vpop.xlane.xlu0 %320
    %v322 = vmul.f32 %v321, 0.125
    %v323 = vadd.f32 %v322, 1e-05
    %v324 = vrsqrt.pop %v323
    %v325 = vmul.f32 %v324, %v323
    %v326 = vmul.f32 %v325, %v324
    %v327 = vmul.f32 0.5, %v326
    %v328 = vsub.f32 1.5, %v327
    %v329 = vmul.f32 %v324, %v328
    %vm330 = vweird.f32 %v323
    %vm331 = vweird.f32 %v324
    %vm332 = vmor %vm330, %vm331
    %v333 = vsel %vm332, %v324, %v329
    %v334 = vstv %s311
    %v335 = vmul.f32 %v334, %v333
    %v336 = vmul.f32 %v316, %v335
    %v337 = vstv %s312
    %v338 = vsub.f32 %v337, %v336
    %v339 = vmul.f32 %v231, %v335
    %v340 = vadd.f32 %v339, %v338
    %v341 = vmax.f32 %v340, 0.0
    %s342 = sld [smem:[#allocation8 + $0x28]]
    %s343 = sld [smem:[#allocation8 + $0x2c]]
    %v344 = vsel %vm60, %v255, 0.0
    %345 = vadd.xlane.f32.xlu0 %v344
    %v346 = vpop.xlane.xlu0 %345
    %v347 = vmul.f32 %v346, 0.125
    %v348 = vsub.f32 %v255, %v347
    %v349 = vmul.f32 %v348, %v348
    %v350 = vsel %vm60, %v349, 0.0
    %351 = vadd.xlane.f32.xlu0 %v350
    %v352 = vpop.xlane.xlu0 %351
    %v353 = vmul.f32 %v352, 0.125
    %v354 = vadd.f32 %v353, 1e-05
    %v355 = vrsqrt.pop %v354
    %v356 = vmul.f32 %v355, %v354
    %v357 = vmul.f32 %v356, %v355
    %v358 = vmul.f32 0.5, %v357
    %v359 = vsub.f32 1.5, %v358
    %v360 = vmul.f32 %v355, %v359
    %vm361 = vweird.f32 %v354
    %vm362 = vweird.f32 %v355
    %vm363 = vmor %vm361, %vm362
    %v364 = vsel %vm363, %v355, %v360
    %v365 = vstv %s342
    %v366 = vmul.f32 %v365, %v364
    %v367 = vmul.f32 %v347, %v366
    %v368 = vstv %s343
    %v369 = vsub.f32 %v368, %v367
    %v370 = vmul.f32 %v255, %v366
    %v371 = vadd.f32 %v370, %v369
    %v372 = vmax.f32 %v371, 0.0
    %s373 = sld [smem:[#allocation8 + $0x29]]
    %s374 = sld [smem:[#allocation8 + $0x2d]]
    %v375 = vsel %vm60, %v279, 0.0
    %376 = vadd.xlane.f32.xlu0 %v375
    %v377 = vpop.xlane.xlu0 %376
    %v378 = vmul.f32 %v377, 0.125
    %v379 = vsub.f32 %v279, %v378
    %v380 = vmul.f32 %v379, %v379
    %v381 = vsel %vm60, %v380, 0.0
    %382 = vadd.xlane.f32.xlu0 %v381
    %v383 = vpop.xlane.xlu0 %382
    %v384 = vmul.f32 %v383, 0.125
    %v385 = vadd.f32 %v384, 1e-05
    %v386 = vrsqrt.pop %v385
    %v387 = vmul.f32 %v386, %v385
    %v388 = vmul.f32 %v387, %v386
    %v389 = vmul.f32 0.5, %v388
    %v390 = vsub.f32 1.5, %v389
    %v391 = vmul.f32 %v386, %v390
    %vm392 = vweird.f32 %v385
    %vm393 = vweird.f32 %v386
    %vm394 = vmor %vm392, %vm393
    %v395 = vsel %vm394, %v386, %v391
    %v396 = vstv %s373
    %v397 = vmul.f32 %v396, %v395
    %v398 = vmul.f32 %v378, %v397
    %v399 = vstv %s374
    %v400 = vsub.f32 %v399, %v398
    %v401 = vmul.f32 %v279, %v397
    %v402 = vadd.f32 %v401, %v400
    %v403 = vmax.f32 %v402, 0.0
    %s404 = sld [smem:[#allocation8 + $0x14]]
    %v405 = vstv %s404
    %v406 = vmul.f32 %v310, %v405
    %s407 = sld [smem:[#allocation8 + $0x15]]
    %v408 = vstv %s407
    %v409 = vmul.f32 %v341, %v408
    %v410 = vadd.f32 %v406, %v409
    %s411 = sld [smem:[#allocation8 + $0x16]]
    %v412 = vstv %s411
    %v413 = vmul.f32 %v372, %v412
    %v414 = vadd.f32 %v410, %v413
    %s415 = sld [smem:[#allocation8 + $0x17]]
    %v416 = vstv %s415
    %v417 = vmul.f32 %v403, %v416
    %v418 = vadd.f32 %v414, %v417
    %s419 = sld [smem:[#allocation8 + $0x1c]]
    %v420 = vstv %s419
    %v421 = vadd.f32 %v418, %v420
    %s422 = sld [smem:[#allocation8 + $0x18]]
    %v423 = vstv %s422
    %v424 = vmul.f32 %v310, %v423
    %s425 = sld [smem:[#allocation8 + $0x19]]
    %v426 = vstv %s425
    %v427 = vmul.f32 %v341, %v426
    %v428 = vadd.f32 %v424, %v427
    %s429 = sld [smem:[#allocation8 + $0x1a]]
    %v430 = vstv %s429
    %v431 = vmul.f32 %v372, %v430
    %v432 = vadd.f32 %v428, %v431
    %s433 = sld [smem:[#allocation8 + $0x1b]]
    %v434 = vstv %s433
    %v435 = vmul.f32 %v403, %v434
    %v436 = vadd.f32 %v432, %v435
    %s437 = sld [smem:[#allocation8 + $0x1d]]
    %v438 = vstv %s437
    %v439 = vadd.f32 %v436, %v438
    %v441 = vrot.slane %v439, 7
    %vm443 = vcmask 1040384
    %v444 = vsel %vm443, %v421, %v441
    %vm445 = vcmask 58368
    %446 = vst.msk [vmem:[#allocation9] sm:$0x3] %vm445, %v444
    // Predicated region
    $region26: #{tpu_custom_call.1} parent=1 // pred_check
      _
    $region27: #{tpu_custom_call.1} parent=1 // pred_check_branch
      %448 = sbr.rel (0) target = $region29
    $region28: #{tpu_custom_call.1} parent=1 // pred_region
      %450 = vsyncadd [#allocation4], 0
      %s452 = sshll.u32 [#allocation9], 4
      %s453 = int_to_ptr.vmem [resolvable:$true] %s452
      %s454 = sshll.u32 %s3, 4
      %s455 = int_to_ptr.hbm [resolvable:$true] %s454
      %457 = dma.vmem_to_hbm [thread:$0]  %s453, 32, %s455, [#allocation4]
    $region29: #{tpu_custom_call.1} parent=1 // pred_fallthru
      _
    // Predicated region
    $region30: #{tpu_custom_call.1} parent=1 // pred_check
      _
    $region31: #{tpu_custom_call.1} parent=1 // pred_check_branch
      %459 = sbr.rel (0) target = $region33
    $region32: #{tpu_custom_call.1} parent=1 // pred_region
      %461 = dma.done [#allocation4], 32
    $region33: #{tpu_custom_call.1} parent=1 // pred_fallthru
      _
    %462 = vsyncpa [#allocation3], 1
    %463 = vsyncpa [#allocation7], 1
    %464 = vsyncpa [#allocation4], 1
    %465 = vsyncpa [#allocation5], 1

</llo_original>
